<compile_context>
chip_gen: v7x
topology: tpu7x:2x2x1
jax: 0.10.0
libtpu: 0.0.40
codegen_flags: <defaults>
</compile_context>

<pallas_src>
import functools

import jax
import jax.numpy as jnp
from jax import lax
from jax.experimental import pallas as pl
from jax.experimental.pallas import tpu as pltpu


# ---------------------------------------------------------------------------
# Kernel
# ---------------------------------------------------------------------------
def basic_block_kernel(x_ref, w1_ref, b1_ref, w2_ref, b2_ref, o_ref, *, split_taps):
    """One (nb, C, L) batch-block of the BasicBlock forward (eval mode)."""
    nb, cin, seq_len = x_ref.shape
    cdt = w1_ref.dtype                           # MXU compute dtype follows folded weights

    # Sequence-boundary masks along the lane axis; computed once per grid step and shared
    # by both convolutions and all batch elements.  Roll wrap-around is always at masked
    # positions because every (C, L) tile is exactly one sequence.
    pos = lax.broadcasted_iota(jnp.int32, (1, seq_len), 1)
    has_left = pos >= 1                          # x_{l-1} exists
    has_right = pos <= seq_len - 2               # x_{l+1} exists

    # Grid-invariant weights / biases: load once per grid step, stay resident.
    w1 = w1_ref[...]                             # (Cout, 3*Cin), tap-major [l-1 | l | l+1]
    w2 = w2_ref[...]                             # (Cout, 3*Cout)
    b1 = b1_ref[...]                             # (Cout, 1) f32
    b2 = b2_ref[...]

    def conv3(a, w):
        # 3-tap "same" conv over the lane axis of a (C, L) tile.
        a_m1 = jnp.where(has_left, pltpu.roll(a, shift=1, axis=1), 0.0)
        a_p1 = jnp.where(has_right, pltpu.roll(a, shift=seq_len - 1, axis=1), 0.0)
        c = a.shape[0]
        if split_taps:
            # Large C: three accumulating MXU matmuls (contraction = C) -> no (3C, L) temp.
            out = jnp.dot(w[:, :c], a_m1.astype(cdt), preferred_element_type=jnp.float32)
            out = out + jnp.dot(w[:, c:2 * c], a.astype(cdt),
                                preferred_element_type=jnp.float32)
            out = out + jnp.dot(w[:, 2 * c:], a_p1.astype(cdt),
                                preferred_element_type=jnp.float32)
            return out
        # Small C: stack the taps along the contraction axis -> a single MXU matmul.
        a3 = jnp.concatenate([a_m1, a, a_p1], axis=0).astype(cdt)
        return jnp.dot(w, a3, preferred_element_type=jnp.float32)

    def process(i):
        h = conv3(x_ref[i], w1) + b1             # conv1 (BN1 scale folded) + BN1 bias, f32
        h = jnp.maximum(h, 0.0)                  # ReLU
        h = conv3(h, w2) + b2                    # conv2 (BN2 scale folded) + BN2 bias
        h = h + x_ref[i].astype(jnp.float32)     # identity residual (re-read, short live range)
        o_ref[i] = jnp.maximum(h, 0.0).astype(o_ref.dtype)

    if nb <= 8:
        # Short static trip count: fully unroll for scheduler visibility.
        for i in range(nb):
            process(i)
    else:
        @pl.loop(0, nb)
        def _(i):
            process(i)


# ---------------------------------------------------------------------------
# Generation-aware VMEM budgets
# ---------------------------------------------------------------------------
@functools.lru_cache(maxsize=1)
def _tpu_vmem_capacity_bytes():
    try:
        info = pltpu.get_tpu_info()
        for name in ("vmem_capacity_bytes", "vmem_size_bytes", "vmem_bytes"):
            cap = getattr(info, name, None)
            if cap:
                return int(cap)
    except Exception:
        pass
    return 64 << 20   # unknown -> assume the smallest (v7x-class) VMEM: always safe


def _budgets():
    """(double-buffered tile budget, vmem_limit cap) per TPU generation."""
    cap = _tpu_vmem_capacity_bytes()
    if cap <= (64 << 20):          # v7x: 64 MiB physical per TensorCore -> leave headroom
        return 18 << 20, 44 << 20
    return 56 << 20, 96 << 20      # v5e / v6e: 128 MiB physical VMEM


def _pick_batch_block(n, cin, cout, seq_len, itemsize, tile_budget):
    """Batch elements per grid step, derived from the VMEM budget (not a fixed lane target)."""
    # Double-buffered input + output tiles dominate the per-step footprint; in-kernel
    # temporaries are per-batch-element (thanks to the per-element loop) and do not scale
    # with nb.
    per_b = 2 * (cin + cout) * seq_len * itemsize
    cap = max(1, int(tile_budget // max(per_b, 1)))
    cap = min(cap, n)
    if n >= 2:
        cap = min(cap, max(1, n // 2))   # keep >= 2 parallel grid steps (v7x: 2 TensorCores)
    # Prefer the largest divisor of n (no batch padding -> no extra HBM copy).
    nb = 1
    for d in range(cap, 0, -1):
        if n % d == 0:
            nb = d
            break
    if 2 * nb < cap:
        nb = cap                          # a divisor would waste >half the budget -> pad instead
    return nb


def _vmem_limit(nb, cin, cout, seq_len, x_itemsize, w_itemsize, limit_cap):
    in_tile = nb * cin * seq_len * x_itemsize
    out_tile = nb * cout * seq_len * x_itemsize
    w_bytes = (3 * cin * cout + 3 * cout * cout) * w_itemsize + 2 * cout * 4
    temps = seq_len * (6 * cin + 8 * cout) * 4          # per-element f32 temporaries (rough)
    need = 2 * (in_tile + out_tile) + 2 * w_bytes + temps + (6 << 20)
    return int(min(max(need, 16 << 20), limit_cap))


# ---------------------------------------------------------------------------
# Wrapper
# ---------------------------------------------------------------------------
@functools.partial(jax.jit, static_argnames=("nb", "split_taps", "vmem_limit"))
def _basic_block_impl(x, w1, b1, w2, b2, *, nb, split_taps, vmem_limit):
    n, cin, seq_len = x.shape
    cout = w1.shape[0]

    n_pad = pl.cdiv(n, nb) * nb
    if n_pad != n:
        # Only taken when no divisor-of-N tile fits the VMEM budget well.
        x = jnp.pad(x, ((0, n_pad - n), (0, 0), (0, 0)))
    num_tiles = n_pad // nb

    x_item = jnp.dtype(x.dtype).itemsize
    w_bytes = ((w1.size + w2.size) * jnp.dtype(w1.dtype).itemsize
               + (b1.size + b2.size) * jnp.dtype(b1.dtype).itemsize)
    cost = pl.CostEstimate(
        flops=int(2 * n_pad * seq_len * cout * 3 * (cin + cout) + 6 * n_pad * seq_len * cout),
        transcendentals=0,
        bytes_accessed=int(x_item * n_pad * seq_len * (cin + cout)) + int(w_bytes),
    )

    # Grid-invariant weights/biases: single-buffered, fetched once.
    invariant = dict(pipeline_mode=pl.Buffered(1))

    out = pl.pallas_call(
        functools.partial(basic_block_kernel, split_taps=split_taps),
        out_shape=jax.ShapeDtypeStruct((n_pad, cout, seq_len), x.dtype),
        grid=(num_tiles,),
        in_specs=[
            pl.BlockSpec((nb, cin, seq_len), lambda t: (t, 0, 0)),          # activations, native NCL
            pl.BlockSpec((cout, 3 * cin), lambda t: (0, 0), **invariant),   # folded conv1 weights
            pl.BlockSpec((cout, 1), lambda t: (0, 0), **invariant),         # BN1 bias
            pl.BlockSpec((cout, 3 * cout), lambda t: (0, 0), **invariant),  # folded conv2 weights
            pl.BlockSpec((cout, 1), lambda t: (0, 0), **invariant),         # BN2 bias
        ],
        out_specs=pl.BlockSpec((nb, cout, seq_len), lambda t: (t, 0, 0)),
        compiler_params=pltpu.CompilerParams(
            dimension_semantics=("parallel",),   # independent batch tiles -> megacore sharding
            vmem_limit_bytes=vmem_limit,
        ),
        cost_estimate=cost,
    )(x, w1, b1, w2, b2)

    return out if n_pad == n else out[:n]


def basic_block(x, w1_folded, b1, w2_folded, b2):
    """BasicBlock forward (eval mode).

    x: (N, Cin, L).  w*_folded: (Cout, 3*Cin)/(Cout, 3*Cout) BN-folded conv weights
    (tap-major columns [x_{l-1} | x_l | x_{l+1}]), b*: (Cout, 1) f32 BN biases.
    """
    n, cin, seq_len = x.shape
    cout = w1_folded.shape[0]
    assert cout == cin, "identity residual requires Cout == Cin (no downsample path)"
    assert w1_folded.shape == (cout, 3 * cin) and w2_folded.shape == (cout, 3 * cout)

    tile_budget, limit_cap = _budgets()
    nb = _pick_batch_block(n, cin, cout, seq_len, jnp.dtype(x.dtype).itemsize, tile_budget)
    split_taps = cin >= 128            # large C: skip the (3C, L) concat temporary
    vmem_limit = _vmem_limit(nb, cin, cout, seq_len,
                             jnp.dtype(x.dtype).itemsize,
                             jnp.dtype(w1_folded.dtype).itemsize, limit_cap)
    return _basic_block_impl(x, w1_folded, b1, w2_folded, b2,
                             nb=nb, split_taps=split_taps, vmem_limit=vmem_limit)


# ---------------------------------------------------------------------------
# Parameter folding + plain-JAX reference
# ---------------------------------------------------------------------------
def fold_bn_into_conv(w_oik, gamma, beta, running_mean, running_var, eps=1e-5,
                      weight_dtype=None):
    """Fold eval-mode BatchNorm1d into a Conv1d weight (PyTorch (Cout, Cin, 3) layout).

    Folding is done in f32; the optional weight cast (e.g. bf16 for v6e/v7x MXU rate)
    happens only at the end.  Bias stays f32 (added to the f32 accumulator in-kernel).
    """
    scale = (gamma / jnp.sqrt(running_var + eps)).astype(jnp.float32)      # (Cout,)
    w = w_oik.astype(jnp.float32) * scale[:, None, None]                   # (Cout, Cin, 3)
    cout, cin, _ = w.shape
    w2d = jnp.transpose(w, (0, 2, 1)).reshape(cout, 3 * cin)               # tap-major columns
    if weight_dtype is not None:
        w2d = w2d.astype(weight_dtype)
    bias = (beta - running_mean * scale)[:, None].astype(jnp.float32)
    return w2d, bias


def _reference(x, w1_oik, w2_oik, g1, be1, rm1, rv1, g2, be2, rm2, rv2, eps=1e-5):
    """Plain-JAX reference matching the PyTorch eval-mode forward (Dropout1d = identity)."""
    dn = ("NCH", "OIH", "NCH")

    def conv(inp, w):
        return lax.conv_general_dilated(inp, w, window_strides=(1,),
                                        padding=((1, 1),), dimension_numbers=dn)

    def bn(inp, g, b, rm, rv):
        s = g / jnp.sqrt(rv + eps)
        return inp * s[None, :, None] + (b - rm * s)[None, :, None]

    out = jnp.maximum(bn(conv(x, w1_oik), g1, be1, rm1, rv1), 0.0)
    out = bn(conv(out, w2_oik), g2, be2, rm2, rv2)
    return jnp.maximum(out + x, 0.0)


# ---------------------------------------------------------------------------
# Test
# ---------------------------------------------------------------------------
if __name__ == "__main__":
    # BasicBlock(inplanes=4, planes=4, stride=1, downsample=None), eval mode.
    N, Cin, L = 2, 4, 16
    Cout = Cin

    key = jax.random.PRNGKey(0)
    ks = jax.random.split(key, 11)

    x = jax.random.normal(ks[0], (N, Cin, L), dtype=jnp.float32)

    # Conv weights in PyTorch layout (Cout, Cin, K=3).
    w1_oik = jax.random.normal(ks[1], (Cout, Cin, 3), jnp.float32) / jnp.sqrt(3.0 * Cin)
    w2_oik = jax.random.normal(ks[2], (Cout, Cout, 3), jnp.float32) / jnp.sqrt(3.0 * Cout)

    # BatchNorm1d params with NON-trivial running stats (exercises the full fold).
    g1 = 1.0 + 0.1 * jax.random.normal(ks[3], (Cout,), jnp.float32)
    be1 = 0.1 * jax.random.normal(ks[4], (Cout,), jnp.float32)
    g2 = 1.0 + 0.1 * jax.random.normal(ks[5], (Cout,), jnp.float32)
    be2 = 0.1 * jax.random.normal(ks[6], (Cout,), jnp.float32)
    rm1 = 0.1 * jax.random.normal(ks[7], (Cout,), jnp.float32)
    rv1 = 1.0 + 0.2 * jax.random.uniform(ks[8], (Cout,), jnp.float32)
    rm2 = 0.1 * jax.random.normal(ks[9], (Cout,), jnp.float32)
    rv2 = 1.0 + 0.2 * jax.random.uniform(ks[10], (Cout,), jnp.float32)

    ref = _reference(x, w1_oik, w2_oik, g1, be1, rm1, rv1, g2, be2, rm2, rv2)

    # --- f32 folded weights: tight correctness check ---------------------------------
    w1_f, b1 = fold_bn_into_conv(w1_oik, g1, be1, rm1, rv1)
    w2_f, b2 = fold_bn_into_conv(w2_oik, g2, be2, rm2, rv2)
    out = jax.block_until_ready(basic_block(x, w1_f, b1, w2_f, b2))
    assert out.shape == (N, Cout, L), out.shape
    max_err = float(jnp.max(jnp.abs(out - ref)))
    assert jnp.allclose(out, ref, atol=1e-4, rtol=1e-4), max_err

    # --- bf16 folded-weight path (production: half the weight DMA, bf16 MXU rate on
    #     v6e/v7x; elementwise math stays f32 inside the kernel) -----------------------
    w1_bf, b1_bf = fold_bn_into_conv(w1_oik, g1, be1, rm1, rv1, weight_dtype=jnp.bfloat16)
    w2_bf, b2_bf = fold_bn_into_conv(w2_oik, g2, be2, rm2, rv2, weight_dtype=jnp.bfloat16)
    out_bf = jax.block_until_ready(basic_block(x, w1_bf, b1_bf, w2_bf, b2_bf))
    assert out_bf.shape == (N, Cout, L), out_bf.shape
    max_err_bf = float(jnp.max(jnp.abs(out_bf - ref)))
    assert jnp.allclose(out_bf, ref, atol=1e-1, rtol=1e-1), max_err_bf

    print("KERNEL_OK")
</pallas_src>

<mosaic_0001>
module attributes {stable_mosaic.version = 11 : i64} {
  func.func @basic_block_kernel(%arg0: i32, %arg1: memref<1x4x16xf32, #tpu.memory_space<vmem>>, %arg2: memref<4x12xf32, #tpu.memory_space<vmem>>, %arg3: memref<4x1xf32, #tpu.memory_space<vmem>>, %arg4: memref<4x12xf32, #tpu.memory_space<vmem>>, %arg5: memref<4x1xf32, #tpu.memory_space<vmem>>, %arg6: memref<1x4x16xf32, #tpu.memory_space<vmem>>) attributes {dimension_semantics = [#tpu.dimension_semantics<parallel>], iteration_bounds = array<i64: 2>, scalar_prefetch = 0 : i64, scratch_operands = 0 : i64, tpu.core_type = #tpu.core_type<tc>, window_params = [{transform_indices = @transform_0, window_bounds = array<i64: 1, 4, 16>}, {pipeline_mode = #tpu.pipeline_mode<synchronous>, transform_indices = @transform_1, window_bounds = array<i64: 4, 12>}, {pipeline_mode = #tpu.pipeline_mode<synchronous>, transform_indices = @transform_2, window_bounds = array<i64: 4, 1>}, {pipeline_mode = #tpu.pipeline_mode<synchronous>, transform_indices = @transform_3, window_bounds = array<i64: 4, 12>}, {pipeline_mode = #tpu.pipeline_mode<synchronous>, transform_indices = @transform_4, window_bounds = array<i64: 4, 1>}, {transform_indices = @transform_5, window_bounds = array<i64: 1, 4, 16>}]} {
    %0 = tpu.iota {dimensions = array<i32: 1>} : vector<1x16xi32>
    %c1_i32 = arith.constant 1 : i32
    %1 = vector.broadcast %c1_i32 : i32 to vector<1x16xi32>
    %2 = arith.cmpi sge, %0, %1 : vector<1x16xi32>
    %c14_i32 = arith.constant 14 : i32
    %3 = vector.broadcast %c14_i32 : i32 to vector<1x16xi32>
    %4 = arith.cmpi sle, %0, %3 : vector<1x16xi32>
    %c0 = arith.constant 0 : index
    %c0_0 = arith.constant 0 : index
    %5 = vector.load %arg2[%c0, %c0_0] : memref<4x12xf32, #tpu.memory_space<vmem>>, vector<4x12xf32>
    %c0_1 = arith.constant 0 : index
    %c0_2 = arith.constant 0 : index
    %6 = vector.load %arg4[%c0_1, %c0_2] : memref<4x12xf32, #tpu.memory_space<vmem>>, vector<4x12xf32>
    %c0_3 = arith.constant 0 : index
    %c0_4 = arith.constant 0 : index
    %7 = vector.load %arg3[%c0_3, %c0_4] : memref<4x1xf32, #tpu.memory_space<vmem>>, vector<4x1xf32>
    %c0_5 = arith.constant 0 : index
    %c0_6 = arith.constant 0 : index
    %8 = vector.load %arg5[%c0_5, %c0_6] : memref<4x1xf32, #tpu.memory_space<vmem>>, vector<4x1xf32>
    %c0_7 = arith.constant 0 : index
    %c0_8 = arith.constant 0 : index
    %c0_9 = arith.constant 0 : index
    %9 = vector.load %arg1[%c0_7, %c0_8, %c0_9] : memref<1x4x16xf32, #tpu.memory_space<vmem>>, vector<1x4x16xf32>
    %10 = vector.shape_cast %9 : vector<1x4x16xf32> to vector<4x16xf32>
    %c1_i32_10 = arith.constant 1 : i32
    %11 = tpu.dynamic_rotate %10 by %c1_i32_10 dim 1 : vector<4x16xf32>, i32 -> vector<4x16xf32>
    %cst = arith.constant 0.000000e+00 : f32
    %12 = vector.shape_cast %2 : vector<1x16xi1> to vector<1x16xi1>
    %13 = vector.broadcast %12 : vector<1x16xi1> to vector<4x16xi1>
    %14 = vector.broadcast %cst : f32 to vector<4x16xf32>
    %15 = arith.select %13, %11, %14 : vector<4x16xi1>, vector<4x16xf32>
    %c15_i32 = arith.constant 15 : i32
    %16 = tpu.dynamic_rotate %10 by %c15_i32 dim 1 : vector<4x16xf32>, i32 -> vector<4x16xf32>
    %cst_11 = arith.constant 0.000000e+00 : f32
    %17 = vector.shape_cast %4 : vector<1x16xi1> to vector<1x16xi1>
    %18 = vector.broadcast %17 : vector<1x16xi1> to vector<4x16xi1>
    %19 = vector.broadcast %cst_11 : f32 to vector<4x16xf32>
    %20 = arith.select %18, %16, %19 : vector<4x16xi1>, vector<4x16xf32>
    %21 = tpu.concatenate %15, %10, %20 in 0 : vector<4x16xf32>, vector<4x16xf32>, vector<4x16xf32> -> vector<12x16xf32>
    %cst_12 = arith.constant dense<0.000000e+00> : vector<4x16xf32>
    %22 = tpu.matmul %5, %21, %cst_12 {dimension_numbers = #tpu.dot_dimension_numbers<[1], [0], [0], [1], [0, 0, 1, 1], [], []>} : vector<4x12xf32>, vector<12x16xf32>, vector<4x16xf32> -> vector<4x16xf32>
    %23 = vector.broadcast %7 : vector<4x1xf32> to vector<4x16xf32>
    %24 = arith.addf %22, %23 : vector<4x16xf32>
    %cst_13 = arith.constant 0.000000e+00 : f32
    %25 = vector.broadcast %cst_13 : f32 to vector<4x16xf32>
    %26 = arith.maximumf %24, %25 : vector<4x16xf32>
    %c1_i32_14 = arith.constant 1 : i32
    %27 = tpu.dynamic_rotate %26 by %c1_i32_14 dim 1 : vector<4x16xf32>, i32 -> vector<4x16xf32>
    %cst_15 = arith.constant 0.000000e+00 : f32
    %28 = vector.shape_cast %2 : vector<1x16xi1> to vector<1x16xi1>
    %29 = vector.broadcast %28 : vector<1x16xi1> to vector<4x16xi1>
    %30 = vector.broadcast %cst_15 : f32 to vector<4x16xf32>
    %31 = arith.select %29, %27, %30 : vector<4x16xi1>, vector<4x16xf32>
    %c15_i32_16 = arith.constant 15 : i32
    %32 = tpu.dynamic_rotate %26 by %c15_i32_16 dim 1 : vector<4x16xf32>, i32 -> vector<4x16xf32>
    %cst_17 = arith.constant 0.000000e+00 : f32
    %33 = vector.shape_cast %4 : vector<1x16xi1> to vector<1x16xi1>
    %34 = vector.broadcast %33 : vector<1x16xi1> to vector<4x16xi1>
    %35 = vector.broadcast %cst_17 : f32 to vector<4x16xf32>
    %36 = arith.select %34, %32, %35 : vector<4x16xi1>, vector<4x16xf32>
    %37 = tpu.concatenate %31, %26, %36 in 0 : vector<4x16xf32>, vector<4x16xf32>, vector<4x16xf32> -> vector<12x16xf32>
    %cst_18 = arith.constant dense<0.000000e+00> : vector<4x16xf32>
    %38 = tpu.matmul %6, %37, %cst_18 {dimension_numbers = #tpu.dot_dimension_numbers<[1], [0], [0], [1], [0, 0, 1, 1], [], []>} : vector<4x12xf32>, vector<12x16xf32>, vector<4x16xf32> -> vector<4x16xf32>
    %39 = vector.broadcast %8 : vector<4x1xf32> to vector<4x16xf32>
    %40 = arith.addf %38, %39 : vector<4x16xf32>
    %c0_19 = arith.constant 0 : index
    %c0_20 = arith.constant 0 : index
    %c0_21 = arith.constant 0 : index
    %41 = vector.load %arg1[%c0_19, %c0_20, %c0_21] : memref<1x4x16xf32, #tpu.memory_space<vmem>>, vector<1x4x16xf32>
    %42 = vector.shape_cast %41 : vector<1x4x16xf32> to vector<4x16xf32>
    %43 = arith.addf %40, %42 : vector<4x16xf32>
    %cst_22 = arith.constant 0.000000e+00 : f32
    %44 = vector.broadcast %cst_22 : f32 to vector<4x16xf32>
    %45 = arith.maximumf %43, %44 : vector<4x16xf32>
    %c0_23 = arith.constant 0 : index
    %c0_24 = arith.constant 0 : index
    %c0_25 = arith.constant 0 : index
    %46 = vector.load %arg6[%c0_23, %c0_24, %c0_25] : memref<1x4x16xf32, #tpu.memory_space<vmem>>, vector<1x4x16xf32>
    %47 = vector.shape_cast %46 : vector<1x4x16xf32> to vector<4x16xf32>
    %48 = vector.shape_cast %45 : vector<4x16xf32> to vector<1x4x16xf32>
    tpu.vector_store %arg6[%c0_23, %c0_24, %c0_25], %48 {strides = array<i32>} : memref<1x4x16xf32, #tpu.memory_space<vmem>>, vector<1x4x16xf32>,
    return
  }
  func.func @transform_0(%arg0: i32) -> (i32, i32, i32) {
    %c0_i32 = arith.constant 0 : i32
    %c0_i32_0 = arith.constant 0 : i32
    %c0_i32_1 = arith.constant 0 : i32
    return %arg0, %c0_i32, %c0_i32_0 : i32, i32, i32
  }
  func.func @transform_1(%arg0: i32) -> (i32, i32) {
    %c0_i32 = arith.constant 0 : i32
    %c0_i32_0 = arith.constant 0 : i32
    %c0_i32_1 = arith.constant 0 : i32
    return %c0_i32, %c0_i32_0 : i32, i32
  }
  func.func @transform_2(%arg0: i32) -> (i32, i32) {
    %c0_i32 = arith.constant 0 : i32
    %c0_i32_0 = arith.constant 0 : i32
    %c0_i32_1 = arith.constant 0 : i32
    return %c0_i32, %c0_i32_0 : i32, i32
  }
  func.func @transform_3(%arg0: i32) -> (i32, i32) {
    %c0_i32 = arith.constant 0 : i32
    %c0_i32_0 = arith.constant 0 : i32
    %c0_i32_1 = arith.constant 0 : i32
    return %c0_i32, %c0_i32_0 : i32, i32
  }
  func.func @transform_4(%arg0: i32) -> (i32, i32) {
    %c0_i32 = arith.constant 0 : i32
    %c0_i32_0 = arith.constant 0 : i32
    %c0_i32_1 = arith.constant 0 : i32
    return %c0_i32, %c0_i32_0 : i32, i32
  }
  func.func @transform_5(%arg0: i32) -> (i32, i32, i32) {
    %c0_i32 = arith.constant 0 : i32
    %c0_i32_0 = arith.constant 0 : i32
    %c0_i32_1 = arith.constant 0 : i32
    return %arg0, %c0_i32, %c0_i32_0 : i32, i32, i32
  }
}

</mosaic_0001>

<llo_original>
// kernel: _basic_block_impl.1
$region0: #{_basic_block_impl.1}
  #allocation0 [shape = 'u32[]', space=smem, size = 0x4, offset = 0x4, fixed_abs, tag = 'smem constant byte address 0x4 - core index']
  #allocation1 [shape = 'u32[144,128]{1,0:T(1,128)}', space=vmem, size = 0x12000, scoped, tag = 'internal scratch']
  %s0 = inlined_call_operand.vmem [shape: f32[2,4,16], index: 0, kind: input, shape index: {}]
  %s1 = inlined_call_operand.vmem [shape: f32[4,12], index: 1, kind: input, shape index: {}]
  %s2 = inlined_call_operand.vmem [shape: f32[4,1], index: 2, kind: input, shape index: {}]
  %s3 = inlined_call_operand.vmem [shape: f32[4,12], index: 3, kind: input, shape index: {}]
  %s4 = inlined_call_operand.vmem [shape: f32[4,1], index: 4, kind: input, shape index: {}]
  %s5 = inlined_call_operand.hbm [shape: f32[2,4,16], index: 5, kind: output, shape index: {}]
  %s6 = sld [smem:[#allocation0]]
  $region53: #{_basic_block_impl.1} parent=0
    _
  %s8 = ssub.s32 1, %s6
  %s9 = scalar_select 0, %s8, %s6
  $region1: #{_basic_block_impl.1} parent=0
    #allocation2 [shape = 'u8[4096]{0}', space=vmem, size = 0x1000, scoped, tag = 'output window, operand 0']
    #allocation3 [shape = 's32[2]{0}', space=sflag, size = 0x8, scoped, tag = 'scoped memory for _basic_block_impl.1']
    %10 = vsyncpa [#allocation3], 0
    %s11 = scalar_lea.sflag [#allocation3], 1
    %12 = vsyncpa %s11, 0
    loop: start=0, step=1, limit=4
    $region2: #{_basic_block_impl.1} parent=1 // loop_pre_header
      _
    $region3: #{_basic_block_impl.1} parent=1 // loop_header
      %s14 = sphi 0, %s18
      %p15 = scmp.ge.s32.totalorder %s14, 4
      %s24 = sphi 0, %s26
      %s27 = sphi 0, %s24
      %s28 = sphi 0, %s27
      %s44 = sphi 0, %s28
      %s48 = sphi 0, %s48
      %s50 = sphi 0, %s48
      %s51 = sphi 0, %s50
      %s65 = sphi 0, %s51
      %s69 = sphi 0, %s69
      %s71 = sphi 0, %s69
      %s72 = sphi 0, %s71
      %s86 = sphi 0, %s72
      %s90 = sphi 0, %s90
      %s92 = sphi 0, %s90
      %s93 = sphi 0, %s92
      %s107 = sphi 0, %s93
      %s111 = sphi 0, %s111
      %s113 = sphi 0, %s111
      %s114 = sphi 0, %s113
      %s128 = sphi 0, %s114
      %s134 = sphi 0, %s136
      %s137 = sphi 0, %s134
      %s138 = sphi 0, %s137
      %s154 = sphi 0, %s138
    $region4: #{_basic_block_impl.1} parent=1 // loop_header_branch
      %17 = sbr.rel (%p15) target = $region8
    $region5: #{_basic_block_impl.1} parent=1 // loop_body
      %s19 = ssub.s32 %s14, 1
      %s20 = ssub.s32 %s14, 2
      %s21 = sadd.s32 %s14, 1
      %s22 = ssub.s32 %s14, %s21
      %p23 = scmp.eq.s32.totalorder %s22, 0
      %s25 = sadd.s32 %s24, 1
      %s26 = scalar_select %p23, %s24, %s25
      %p29 = pneg %p23
      %p30 = scmp.eq.s32.totalorder %s14, 1
      %p31 = por %p29, %p30
      %p32 = scmp.ne.s32.totalorder %s24, %s27
      %p33 = scmp.eq.s32.totalorder %s14, 0
      %p34 = por %p32, %p33
      %p35 = scmp.ne.s32.totalorder %s24, %s27
      %p36 = scmp.eq.s32.totalorder %s19, 1
      %p37 = por %p35, %p36
      %p38 = scmp.ne.s32.totalorder %s27, %s28
      %p39 = scmp.eq.s32.totalorder %s19, 0
      %p40 = por %p38, %p39
      %p41 = scmp.ne.s32.totalorder %s27, %s28
      %p42 = scmp.eq.s32.totalorder %s20, 1
      %p43 = por %p41, %p42
      %p45 = scmp.ne.s32.totalorder %s28, %s44
      %p46 = scmp.eq.s32.totalorder %s20, 0
      %p47 = por %p45, %p46
      %s49 = sadd.s32 %s48, 1
      %p52 = scmp.eq.s32.totalorder %s14, 1
      %p53 = scmp.ne.s32.totalorder %s48, %s50
      %p54 = scmp.eq.s32.totalorder %s14, 0
      %p55 = por %p53, %p54
      %p56 = scmp.ne.s32.totalorder %s48, %s50
      %p57 = scmp.eq.s32.totalorder %s19, 1
      %p58 = por %p56, %p57
      %p59 = scmp.ne.s32.totalorder %s50, %s51
      %p60 = scmp.eq.s32.totalorder %s19, 0
      %p61 = por %p59, %p60
      %p62 = scmp.ne.s32.totalorder %s50, %s51
      %p63 = scmp.eq.s32.totalorder %s20, 1
      %p64 = por %p62, %p63
      %p66 = scmp.ne.s32.totalorder %s51, %s65
      %p67 = scmp.eq.s32.totalorder %s20, 0
      %p68 = por %p66, %p67
      %s70 = sadd.s32 %s69, 1
      %p73 = scmp.eq.s32.totalorder %s14, 1
      %p74 = scmp.ne.s32.totalorder %s69, %s71
      %p75 = scmp.eq.s32.totalorder %s14, 0
      %p76 = por %p74, %p75
      %p77 = scmp.ne.s32.totalorder %s69, %s71
      %p78 = scmp.eq.s32.totalorder %s19, 1
      %p79 = por %p77, %p78
      %p80 = scmp.ne.s32.totalorder %s71, %s72
      %p81 = scmp.eq.s32.totalorder %s19, 0
      %p82 = por %p80, %p81
      %p83 = scmp.ne.s32.totalorder %s71, %s72
      %p84 = scmp.eq.s32.totalorder %s20, 1
      %p85 = por %p83, %p84
      %p87 = scmp.ne.s32.totalorder %s72, %s86
      %p88 = scmp.eq.s32.totalorder %s20, 0
      %p89 = por %p87, %p88
      %s91 = sadd.s32 %s90, 1
      %p94 = scmp.eq.s32.totalorder %s14, 1
      %p95 = scmp.ne.s32.totalorder %s90, %s92
      %p96 = scmp.eq.s32.totalorder %s14, 0
      %p97 = por %p95, %p96
      %p98 = scmp.ne.s32.totalorder %s90, %s92
      %p99 = scmp.eq.s32.totalorder %s19, 1
      %p100 = por %p98, %p99
      %p101 = scmp.ne.s32.totalorder %s92, %s93
      %p102 = scmp.eq.s32.totalorder %s19, 0
      %p103 = por %p101, %p102
      %p104 = scmp.ne.s32.totalorder %s92, %s93
      %p105 = scmp.eq.s32.totalorder %s20, 1
      %p106 = por %p104, %p105
      %p108 = scmp.ne.s32.totalorder %s93, %s107
      %p109 = scmp.eq.s32.totalorder %s20, 0
      %p110 = por %p108, %p109
      %s112 = sadd.s32 %s111, 1
      %p115 = scmp.eq.s32.totalorder %s14, 1
      %p116 = scmp.ne.s32.totalorder %s111, %s113
      %p117 = scmp.eq.s32.totalorder %s14, 0
      %p118 = por %p116, %p117
      %p119 = scmp.ne.s32.totalorder %s111, %s113
      %p120 = scmp.eq.s32.totalorder %s19, 1
      %p121 = por %p119, %p120
      %p122 = scmp.ne.s32.totalorder %s113, %s114
      %p123 = scmp.eq.s32.totalorder %s19, 0
      %p124 = por %p122, %p123
      %p125 = scmp.ne.s32.totalorder %s113, %s114
      %p126 = scmp.eq.s32.totalorder %s20, 1
      %p127 = por %p125, %p126
      %p129 = scmp.ne.s32.totalorder %s114, %s128
      %p130 = scmp.eq.s32.totalorder %s20, 0
      %p131 = por %p129, %p130
      %s132 = ssub.s32 %s14, %s21
      %p133 = scmp.eq.s32.totalorder %s132, 0
      %s135 = sadd.s32 %s134, 1
      %s136 = scalar_select %p133, %s134, %s135
      %p139 = pneg %p133
      %p140 = scmp.eq.s32.totalorder %s14, 1
      %p141 = por %p139, %p140
      %p142 = scmp.ne.s32.totalorder %s134, %s137
      %p143 = scmp.eq.s32.totalorder %s14, 0
      %p144 = por %p142, %p143
      %p145 = scmp.ne.s32.totalorder %s134, %s137
      %p146 = scmp.eq.s32.totalorder %s19, 1
      %p147 = por %p145, %p146
      %p148 = scmp.ne.s32.totalorder %s137, %s138
      %p149 = scmp.eq.s32.totalorder %s19, 0
      %p150 = por %p148, %p149
      %p151 = scmp.ne.s32.totalorder %s137, %s138
      %p152 = scmp.eq.s32.totalorder %s20, 1
      %p153 = por %p151, %p152
      %p155 = scmp.ne.s32.totalorder %s138, %s154
      %p156 = scmp.eq.s32.totalorder %s20, 0
      %p157 = por %p155, %p156
      %p158 = scmp.le.s32.totalorder 1, %s14
      %p159 = scmp.lt.s32.totalorder %s14, 3
      %p160 = pnand %p158, %p159
      %p161 = pneg %p160
      // Predicated region
      $region9: #{_basic_block_impl.1} parent=5 // pred_check
        _
      $region10: #{_basic_block_impl.1} parent=5 // pred_check_branch
        %163 = sbr.rel (%p160) target = $region12
      $region11: #{_basic_block_impl.1} parent=5 // pred_region
        %s164 = ssub.s32 %s14, 1
        // Predicated region
        $region13: #{_basic_block_impl.1} parent=11 // pred_check
          %p165 = pneg %p61
        $region14: #{_basic_block_impl.1} parent=11 // pred_check_branch
          %167 = sbr.rel (%p165) target = $region16
        $region15: #{_basic_block_impl.1} parent=11 // pred_region
          _
        $region16: #{_basic_block_impl.1} parent=11 // pred_fallthru
          _
        // Predicated region
        $region17: #{_basic_block_impl.1} parent=11 // pred_check
          %p168 = pneg %p82
        $region18: #{_basic_block_impl.1} parent=11 // pred_check_branch
          %170 = sbr.rel (%p168) target = $region20
        $region19: #{_basic_block_impl.1} parent=11 // pred_region
          _
        $region20: #{_basic_block_impl.1} parent=11 // pred_fallthru
          _
        // Predicated region
        $region21: #{_basic_block_impl.1} parent=11 // pred_check
          %p171 = pneg %p103
        $region22: #{_basic_block_impl.1} parent=11 // pred_check_branch
          %173 = sbr.rel (%p171) target = $region24
        $region23: #{_basic_block_impl.1} parent=11 // pred_region
          _
        $region24: #{_basic_block_impl.1} parent=11 // pred_fallthru
          _
        // Predicated region
        $region25: #{_basic_block_impl.1} parent=11 // pred_check
          %p174 = pneg %p124
        $region26: #{_basic_block_impl.1} parent=11 // pred_check_branch
          %176 = sbr.rel (%p174) target = $region28
        $region27: #{_basic_block_impl.1} parent=11 // pred_region
          _
        $region28: #{_basic_block_impl.1} parent=11 // pred_fallthru
          _
      $region12: #{_basic_block_impl.1} parent=5 // pred_fallthru
        _
      %p177 = scmp.lt.s32.totalorder %s14, 2
      // Predicated region
      $region29: #{_basic_block_impl.1} parent=5 // pred_check
        %p178 = pneg %p177
      $region30: #{_basic_block_impl.1} parent=5 // pred_check_branch
        %180 = sbr.rel (%p178) target = $region32
      $region31: #{_basic_block_impl.1} parent=5 // pred_region
        // Predicated region
        $region33: #{_basic_block_impl.1} parent=31 // pred_check
          %p181 = pneg %p34
        $region34: #{_basic_block_impl.1} parent=31 // pred_check_branch
          %183 = sbr.rel (%p181) target = $region36
        $region35: #{_basic_block_impl.1} parent=31 // pred_region
          %p184 = scmp.lt.s32.totalorder %s14, 1
          %s185 = scalar_select %p184, %s14, 1
          %s186 = smul.addr %s185, 4
          %s187 = scalar_lea.vmem %s0, %s186
        $region36: #{_basic_block_impl.1} parent=31 // pred_fallthru
          _
      $region32: #{_basic_block_impl.1} parent=5 // pred_fallthru
        _
      %p188 = scmp.le.s32.totalorder 1, %s14
      %p189 = scmp.lt.s32.totalorder %s14, 3
      %p190 = pnand %p188, %p189
      %p191 = pneg %p190
      // Predicated region
      $region37: #{_basic_block_impl.1} parent=5 // pred_check
        _
      $region38: #{_basic_block_impl.1} parent=5 // pred_check_branch
        %193 = sbr.rel (%p190) target = $region40
      $region39: #{_basic_block_impl.1} parent=5 // pred_region
        %s194 = ssub.s32 %s14, 1
        %p195 = scmp.lt.s32.totalorder %s19, 1
        %s196 = scalar_select %p195, %s19, 1
        %s197 = smul.addr %s196, 4
        %s198 = scalar_lea.vmem %s0, %s197
        %p199 = pneg %p40
        %p200 = pneg %p37
        %p201 = pneg %p61
        %p202 = pneg %p58
        %p203 = pneg %p82
        %p204 = pneg %p79
        %p205 = pneg %p103
        %p206 = pneg %p100
        %p207 = pneg %p124
        %p208 = pneg %p121
        %p209 = pneg %p150
        %p210 = pneg %p147
        %s211 = sand.u32 %s137, 1
        %s212 = scalar_lea.sflag [#allocation3], %s211
        %s213 = sand.u32 %s137, 1
        %s214 = smul.addr %s213, 4
        %s215 = scalar_lea.vmem [#allocation2], %s214
        %p216 = scmp.lt.s32.totalorder %s19, 1
        %s217 = scalar_select %p216, %s19, 1
        %s218 = smul.addr %s217, 4
        %s219 = scalar_lea.vmem %s0, %s218
        %v220 = vlaneseq
        %v221 = vand.u32 %v220, 127
        %vm222 = vcmp.ge.s32.totalorder %v221, 1
        %vm223 = vcmp.le.s32.totalorder %v221, 14
        %v224 = vld [vmem:[%s1] sm:$0xf]
        %v225 = vld [vmem:[%s3] sm:$0xf]
        %v226 = vld [vmem:[%s2] sm:$0xf]
        %v227 = vld [vmem:[%s4] sm:$0xf]
        %v228 = vld [vmem:[%s219] sm:$0xf]
        %vm229 = vcmask 1047680
        %230 = vrot.lane.b32.xlu0 %v228, 16
        %v231 = vpop.permute.xlu0 %230
        %v232 = vsel %vm229, %v231, %v228
        %233 = vrot.lane.b32.xlu0 %v232, 16
        %v234 = vpop.permute.xlu0 %233
        %v235 = vsel %vm229, %v234, %v228
        %v236 = vsel %vm222, 1, 0
        %vm237 = vcmp.eq.s32.totalorder %v236, 1
        %239 = vrot.lane.b32.xlu0 %v235, 113
        %v240 = vpop.permute.xlu0 %239
        %v242 = vsel %vm237, %v240, 0.0
        %v243 = vsel %vm223, 1, 0
        %vm244 = vcmp.eq.s32.totalorder %v243, 1
        %245 = vrot.lane.b32.xlu0 %v235, 127
        %v246 = vpop.permute.xlu0 %245
        %v248 = vsel %vm244, %v246, 0.0
        %v250 = vrot.slane %v228, 4
        %vm252 = vcmask 1043456
        %v253 = vsel %vm252, %v242, %v250
        %255 = vset.pattern.permute.xlu0 0
        %256 = vperm.xlu0 %255, %v226
        %v257 = vpop.permute.xlu0 %256
        %vm259 = vcmask 97280
        %v261 = vsel %vm259, %v224, 0
        %v264 = vsel %vm252, %v248, 0
        %266 = vmatprep.subr.mxu0 0.0
        %267 = vmatpush1.msra.mxu0 %v253
        %268 = vmatprep.subr.mxu0 0.0
        %269 = vmatpush1.msra.mxu0 %v264
        %270 = vmatprep.subr.mxu0 0.0
        %271 = vmatpush1.msra.mxu0 0.0
        %272 = vmatprep.subr.mxu0 0.0
        %273 = vmatpush1.msra.mxu0 0.0
        %274 = vmatprep.subr.mxu0 0.0
        %275 = vmatpush1.msra.mxu0 0.0
        %276 = vmatprep.subr.mxu0 0.0
        %277 = vmatpush1.msra.mxu0 0.0
        %278 = vmatprep.subr.mxu0 0.0
        %279 = vmatpush1.msra.mxu0 0.0
        %280 = vmatprep.subr.mxu0 0.0
        %281 = vmatpush1.msra.mxu0 0.0
        %282 = vmatprep.subr.mxu0 0.0
        %283 = vmatpush1.msra.mxu0 0.0
        %284 = vmatprep.subr.mxu0 0.0
        %285 = vmatpush1.msra.mxu0 0.0
        %286 = vmatprep.subr.mxu0 0.0
        %287 = vmatpush1.msra.mxu0 0.0
        %288 = vmatprep.subr.mxu0 0.0
        %289 = vmatpush1.msra.mxu0 0.0
        %290 = vmatprep.subr.mxu0 0.0
        %291 = vmatpush1.msra.mxu0 0.0
        %292 = vmatprep.subr.mxu0 0.0
        %293 = vmatpush1.msra.mxu0 0.0
        %294 = vmatprep.subr.mxu0 0.0
        %295 = vmatpush1.msra.mxu0 0.0
        %296 = vmatprep.subr.mxu0 0.0
        %297 = vmatpush1.msra.mxu0 0.0
        %298 = vmatprep.subr.mxu0 0.0
        %299 = vmatpush1.msra.mxu0 0.0
        %300 = vmatprep.subr.mxu0 0.0
        %301 = vmatpush1.msra.mxu0 0.0
        %302 = vmatprep.subr.mxu0 0.0
        %303 = vmatpush1.msra.mxu0 0.0
        %304 = vmatprep.subr.mxu0 0.0
        %305 = vmatpush1.msra.mxu0 0.0
        %306 = vmatprep.subr.mxu0 0.0
        %307 = vmatpush1.msra.mxu0 0.0
        %308 = vmatprep.subr.mxu0 0.0
        %309 = vmatpush1.msra.mxu0 0.0
        %310 = vmatprep.subr.mxu0 0.0
        %311 = vmatpush1.msra.mxu0 0.0
        %312 = vmatprep.subr.mxu0 0.0
        %313 = vmatpush1.msra.mxu0 0.0
        %314 = vmatprep.subr.mxu0 0.0
        %315 = vmatpush1.msra.mxu0 0.0
        %316 = vmatprep.subr.mxu0 0.0
        %317 = vmatpush1.msra.mxu0 0.0
        %318 = vmatprep.subr.mxu0 0.0
        %319 = vmatpush1.msra.mxu0 0.0
        %320 = vmatprep.subr.mxu0 0.0
        %321 = vmatpush1.msra.mxu0 0.0
        %322 = vmatprep.subr.mxu0 0.0
        %323 = vmatpush1.msra.mxu0 0.0
        %324 = vmatprep.subr.mxu0 0.0
        %325 = vmatpush1.msra.mxu0 0.0
        %326 = vmatprep.subr.mxu0 0.0
        %327 = vmatpush1.msra.mxu0 0.0
        %328 = vmatprep.subr.mxu0 0.0
        %329 = vmatpush1.msra.mxu0 0.0
        %330 = vmatprep.mubr.f32.mxu0 0.0
        %331 = vmatmul.mubr.f32.gmra.mrb[0].mxu0 %v261
        %v332 = vpop.f32.mrb[0].mxu0
        %v333 = vadd.f32 %v257, %v332
        %v334 = vpop.f32.mrb[0].mxu0
        %335 = vdwg.mxu0
        %v336 = vmax.f32 %v333, 0.0
        %337 = vrot.lane.b32.xlu0 %v336, 16
        %v338 = vpop.permute.xlu0 %337
        %v339 = vsel %vm229, %v338, %v336
        %340 = vrot.lane.b32.xlu0 %v339, 16
        %v341 = vpop.permute.xlu0 %340
        %v342 = vsel %vm229, %v341, %v336
        %344 = vrot.lane.b32.xlu0 %v342, 113
        %v345 = vpop.permute.xlu0 %344
        %v347 = vsel %vm237, %v345, 0.0
        %348 = vrot.lane.b32.xlu0 %v342, 127
        %v349 = vpop.permute.xlu0 %348
        %v351 = vsel %vm244, %v349, 0.0
        %v353 = vrot.slane %v336, 4
        %v355 = vsel %vm252, %v347, %v353
        %357 = vset.pattern.permute.xlu0 0
        %358 = vperm.xlu0 %357, %v227
        %v359 = vpop.permute.xlu0 %358
        %v362 = vsel %vm259, %v225, 0
        %v365 = vsel %vm252, %v351, 0
        %367 = vmatprep.subr.mxu0 0.0
        %368 = vmatpush1.msra.mxu0 %v355
        %369 = vmatprep.subr.mxu0 0.0
        %370 = vmatpush1.msra.mxu0 %v365
        %371 = vmatprep.subr.mxu0 0.0
        %372 = vmatpush1.msra.mxu0 0.0
        %373 = vmatprep.subr.mxu0 0.0
        %374 = vmatpush1.msra.mxu0 0.0
        %375 = vmatprep.subr.mxu0 0.0
        %376 = vmatpush1.msra.mxu0 0.0
        %377 = vmatprep.subr.mxu0 0.0
        %378 = vmatpush1.msra.mxu0 0.0
        %379 = vmatprep.subr.mxu0 0.0
        %380 = vmatpush1.msra.mxu0 0.0
        %381 = vmatprep.subr.mxu0 0.0
        %382 = vmatpush1.msra.mxu0 0.0
        %383 = vmatprep.subr.mxu0 0.0
        %384 = vmatpush1.msra.mxu0 0.0
        %385 = vmatprep.subr.mxu0 0.0
        %386 = vmatpush1.msra.mxu0 0.0
        %387 = vmatprep.subr.mxu0 0.0
        %388 = vmatpush1.msra.mxu0 0.0
        %389 = vmatprep.subr.mxu0 0.0
        %390 = vmatpush1.msra.mxu0 0.0
        %391 = vmatprep.subr.mxu0 0.0
        %392 = vmatpush1.msra.mxu0 0.0
        %393 = vmatprep.subr.mxu0 0.0
        %394 = vmatpush1.msra.mxu0 0.0
        %395 = vmatprep.subr.mxu0 0.0
        %396 = vmatpush1.msra.mxu0 0.0
        %397 = vmatprep.subr.mxu0 0.0
        %398 = vmatpush1.msra.mxu0 0.0
        %399 = vmatprep.subr.mxu0 0.0
        %400 = vmatpush1.msra.mxu0 0.0
        %401 = vmatprep.subr.mxu0 0.0
        %402 = vmatpush1.msra.mxu0 0.0
        %403 = vmatprep.subr.mxu0 0.0
        %404 = vmatpush1.msra.mxu0 0.0
        %405 = vmatprep.subr.mxu0 0.0
        %406 = vmatpush1.msra.mxu0 0.0
        %407 = vmatprep.subr.mxu0 0.0
        %408 = vmatpush1.msra.mxu0 0.0
        %409 = vmatprep.subr.mxu0 0.0
        %410 = vmatpush1.msra.mxu0 0.0
        %411 = vmatprep.subr.mxu0 0.0
        %412 = vmatpush1.msra.mxu0 0.0
        %413 = vmatprep.subr.mxu0 0.0
        %414 = vmatpush1.msra.mxu0 0.0
        %415 = vmatprep.subr.mxu0 0.0
        %416 = vmatpush1.msra.mxu0 0.0
        %417 = vmatprep.subr.mxu0 0.0
        %418 = vmatpush1.msra.mxu0 0.0
        %419 = vmatprep.subr.mxu0 0.0
        %420 = vmatpush1.msra.mxu0 0.0
        %421 = vmatprep.subr.mxu0 0.0
        %422 = vmatpush1.msra.mxu0 0.0
        %423 = vmatprep.subr.mxu0 0.0
        %424 = vmatpush1.msra.mxu0 0.0
        %425 = vmatprep.subr.mxu0 0.0
        %426 = vmatpush1.msra.mxu0 0.0
        %427 = vmatprep.subr.mxu0 0.0
        %428 = vmatpush1.msra.mxu0 0.0
        %429 = vmatprep.subr.mxu0 0.0
        %430 = vmatpush1.msra.mxu0 0.0
        %431 = vmatprep.mubr.f32.mxu0 0.0
        %432 = vmatmul.mubr.f32.gmra.mrb[0].mxu0 %v362
        %v433 = vpop.f32.mrb[0].mxu0
        %v434 = vadd.f32 %v359, %v433
        %v435 = vpop.f32.mrb[0].mxu0
        %436 = vdwg.mxu0
        %v437 = vadd.f32 %v434, %v228
        %v438 = vmax.f32 %v437, 0.0
        %vm439 = vcmask 125952
        %440 = vst.msk [vmem:[%s215] sm:$0xf] %vm439, %v438
        %s441 = sand.u32 %s137, 1
        %s442 = scalar_lea.sflag [#allocation3], %s441
        %s443 = sand.u32 %s137, 1
        %s444 = smul.addr %s443, 4
        %s445 = scalar_lea.vmem [#allocation2], %s444
        // Predicated region
        $region41: #{_basic_block_impl.1} parent=39 // pred_check
          %p446 = pneg %p147
        $region42: #{_basic_block_impl.1} parent=39 // pred_check_branch
          %448 = sbr.rel (%p446) target = $region44
        $region43: #{_basic_block_impl.1} parent=39 // pred_region
          %s450 = ssub.s32 64, 64
          %451 = vsyncadd %s442, %s450
          %s452 = smul.addr %s19, 64
          %s453 = scalar_lea.hbm %s5, %s452
          %s455 = sshll.u32 %s445, 4
          %s456 = int_to_ptr.vmem [resolvable:$true] %s455
          %458 = dma.vmem_to_hbm [thread:$0]  %s456, 64, %s453, %s442
        $region44: #{_basic_block_impl.1} parent=39 // pred_fallthru
          _
      $region40: #{_basic_block_impl.1} parent=5 // pred_fallthru
        _
      %p459 = scmp.le.s32.totalorder 2, %s14
      // Predicated region
      $region45: #{_basic_block_impl.1} parent=5 // pred_check
        %p460 = pneg %p459
      $region46: #{_basic_block_impl.1} parent=5 // pred_check_branch
        %462 = sbr.rel (%p460) target = $region48
      $region47: #{_basic_block_impl.1} parent=5 // pred_region
        %s463 = ssub.s32 %s14, 2
        // Predicated region
        $region49: #{_basic_block_impl.1} parent=47 // pred_check
          %p464 = pneg %p153
        $region50: #{_basic_block_impl.1} parent=47 // pred_check_branch
          %466 = sbr.rel (%p464) target = $region52
        $region51: #{_basic_block_impl.1} parent=47 // pred_region
          %s467 = sand.u32 %s138, 1
          %s468 = scalar_lea.sflag [#allocation3], %s467
          %s469 = sand.u32 %s138, 1
          %s470 = smul.addr %s469, 4
          %s471 = scalar_lea.vmem [#allocation2], %s470
          %472 = dma.done %s468, 64
        $region52: #{_basic_block_impl.1} parent=47 // pred_fallthru
          _
      $region48: #{_basic_block_impl.1} parent=5 // pred_fallthru
        _
    $region6: #{_basic_block_impl.1} parent=1 // loop_footer
      %s18 = sadd.s32 1, %s14
    $region7: #{_basic_block_impl.1} parent=1 // loop_footer_branch
      %13 = sbr.rel target = $region3
    $region8: #{_basic_block_impl.1} parent=1 // loop_exit
      _
    %473 = vsyncpa [#allocation3], 1
    %s474 = scalar_lea.sflag [#allocation3], 1
    %475 = vsyncpa %s474, 1

</llo_original>
